<compile_context>
chip_gen: v7x
topology: tpu7x:2x2x1
jax: 0.10.0
libtpu: 0.0.40
codegen_flags: <defaults>
</compile_context>

<pallas_src>
import functools

import jax
import jax.numpy as jnp
from jax.experimental import pallas as pl
from jax.experimental.pallas import tpu as pltpu


def mlp_kernel(x_ref, w1t_ref, b1_ref, w2_ref, b2_ref, out_ref,
               *, in_size, out_size):
    # ---- Hidden layer: (B, in) x (in, H1) with tiny K -> VPU broadcast FMAs.
    # x_ref[:, k:k+1] is a lane-broadcast column, w1t_ref[k:k+1, :] a
    # sublane-broadcast row; their product accumulates on the VPU (no MXU).
    h = x_ref[:, 0:1] * w1t_ref[0:1, :]
    for k in range(1, in_size):
        h = h + x_ref[:, k:k + 1] * w1t_ref[k:k + 1, :]
    z1 = h + b1_ref[...]                                    # (B, H1)
    # sigmoid(z) = 1 / (1 + exp(-z)): exp and approx reciprocal both on EUP.
    h = pl.reciprocal(1.0 + jnp.exp(-z1), approx=True)      # (B, H1)

    # ---- Output layer: tiny N -> per-column VPU multiply + XLU lane reduce
    # (w2 kept in its native PyTorch (out_size, H1) layout, no transpose).
    for j in range(out_size):
        z2 = jnp.sum(h * w2_ref[j:j + 1, :], axis=-1, keepdims=True)   # (B, 1)
        z2 = z2 + b2_ref[j]                                 # scalar bias from SMEM
        y = pl.reciprocal(1.0 + jnp.exp(-z2), approx=True)  # (B, 1)

        # Packed output slab: columns [0, out) hold y, [out, 2*out) hold pred.
        out_ref[:, j:j + 1] = y.astype(out_ref.dtype)
        # Fused Model.predict(): sigmoid(z) >= 0.5  <=>  z >= 0 (monotone),
        # so pred depends only on the logit, not on the EUP sigmoid result.
        out_ref[:, out_size + j:out_size + j + 1] = jnp.where(
            z2 >= 0.0, 1.0, 0.0).astype(out_ref.dtype)


@jax.jit
def mlp_forward(x, w1, b1, w2, b2):
    """Fused forward + predict. Params follow the PyTorch nn.Linear convention:
    w1: (H1, in), b1: (H1,), w2: (out, H1), b2: (out,). Returns (y, preds)."""
    batch, in_size = x.shape
    out_size, h1 = w2.shape

    # Layout prep is inside the jit -> fused into the single dispatch.
    w1t = w1.T                                   # (in_size, H1) for broadcast FMAs
    b1_row = b1.reshape(1, h1)                   # (1, H1) row bias (VMEM)
    b2_vec = b2.reshape(out_size)                # (out_size,) scalar bias (SMEM)

    kernel = functools.partial(mlp_kernel, in_size=in_size, out_size=out_size)

    # Small problem: no grid, whole operands resident in VMEM (b2 in SMEM).
    packed = pl.pallas_call(
        kernel,
        out_shape=jax.ShapeDtypeStruct((batch, 2 * out_size), jnp.float32),
        in_specs=[
            pl.BlockSpec(memory_space=pltpu.MemorySpace.VMEM),   # x
            pl.BlockSpec(memory_space=pltpu.MemorySpace.VMEM),   # W1^T
            pl.BlockSpec(memory_space=pltpu.MemorySpace.VMEM),   # b1 row
            pl.BlockSpec(memory_space=pltpu.MemorySpace.VMEM),   # W2 (native layout)
            pl.BlockSpec(memory_space=pltpu.MemorySpace.SMEM),   # b2 scalar(s)
        ],
        out_specs=pl.BlockSpec(memory_space=pltpu.MemorySpace.VMEM),
    )(x, w1t, b1_row, w2, b2_vec)

    y = packed[:, :out_size]
    preds = packed[:, out_size:]
    return y, preds


def forward(x, w1, b1, w2, b2):
    """Mirror of Model.forward."""
    y, _ = mlp_forward(x, w1, b1, w2, b2)
    return y


def predict(x, w1, b1, w2, b2):
    """Mirror of Model.predict (batched): threshold the sigmoid output at 0.5."""
    _, preds = mlp_forward(x, w1, b1, w2, b2)
    return preds


if __name__ == "__main__":
    # Shapes implied by the module: input_size=2, H1=32, output_size=1, batch=8.
    input_size, H1, output_size, batch = 2, 32, 1, 8

    key = jax.random.PRNGKey(0)
    k_x, k_w1, k_b1, k_w2, k_b2 = jax.random.split(key, 5)

    x = jax.random.normal(k_x, (batch, input_size), dtype=jnp.float32)
    # Deterministic synthetic parameters (PyTorch nn.Linear shape convention).
    w1 = jax.random.normal(k_w1, (H1, input_size), dtype=jnp.float32) * 0.1
    b1 = jax.random.normal(k_b1, (H1,), dtype=jnp.float32) * 0.1
    w2 = jax.random.normal(k_w2, (output_size, H1), dtype=jnp.float32) * 0.1
    b2 = jax.random.normal(k_b2, (output_size,), dtype=jnp.float32) * 0.1

    y, preds = mlp_forward(x, w1, b1, w2, b2)
    jax.block_until_ready((y, preds))

    # Reference check in plain JAX (exact sigmoids; kernel uses EUP approx
    # reciprocal, so allow a small absolute tolerance).
    z1_ref = x @ w1.T + b1[None, :]
    h_ref = jax.nn.sigmoid(z1_ref)
    z2_ref = h_ref @ w2.T + b2[None, :]
    y_ref = jax.nn.sigmoid(z2_ref)
    assert y.shape == (batch, output_size) and preds.shape == (batch, output_size)
    assert jnp.allclose(y, y_ref, atol=5e-3), "forward mismatch vs reference"

    # predict: sigmoid(z) >= 0.5  <=>  z >= 0. Only compare away from the
    # decision boundary (approx sigmoid could legitimately flip ties).
    pred_ref = jnp.where(z2_ref >= 0.0, 1.0, 0.0)
    decisive = jnp.abs(z2_ref) > 1e-3
    assert not bool(jnp.any((preds != pred_ref) & decisive)), "predict mismatch"

    print("KERNEL_OK")
</pallas_src>

<mosaic_0001>
module attributes {stable_mosaic.version = 11 : i64} {
  func.func @mlp_kernel(%arg0: memref<8x2xf32, #tpu.memory_space<vmem>>, %arg1: memref<2x32xf32, #tpu.memory_space<vmem>>, %arg2: memref<1x32xf32, #tpu.memory_space<vmem>>, %arg3: memref<1x32xf32, #tpu.memory_space<vmem>>, %arg4: memref<1xf32, #tpu.memory_space<smem>>, %arg5: memref<8x2xf32, #tpu.memory_space<vmem>>) attributes {dimension_semantics = [], scalar_prefetch = 0 : i64, scratch_operands = 0 : i64, tpu.core_type = #tpu.core_type<tc>} {
    %c0 = arith.constant 0 : index
    %c0_0 = arith.constant 0 : index
    %0 = vector.load %arg0[%c0, %c0_0] : memref<8x2xf32, #tpu.memory_space<vmem>>, vector<8x1xf32>
    %c0_1 = arith.constant 0 : index
    %c0_2 = arith.constant 0 : index
    %1 = vector.load %arg1[%c0_1, %c0_2] : memref<2x32xf32, #tpu.memory_space<vmem>>, vector<1x32xf32>
    %2 = vector.broadcast %0 : vector<8x1xf32> to vector<8x32xf32>
    %3 = vector.broadcast %1 : vector<1x32xf32> to vector<8x32xf32>
    %4 = arith.mulf %2, %3 : vector<8x32xf32>
    %c0_3 = arith.constant 0 : index
    %c1 = arith.constant 1 : index
    %5 = vector.load %arg0[%c0_3, %c1] : memref<8x2xf32, #tpu.memory_space<vmem>>, vector<8x1xf32>
    %c1_4 = arith.constant 1 : index
    %c0_5 = arith.constant 0 : index
    %6 = vector.load %arg1[%c1_4, %c0_5] : memref<2x32xf32, #tpu.memory_space<vmem>>, vector<1x32xf32>
    %7 = vector.broadcast %5 : vector<8x1xf32> to vector<8x32xf32>
    %8 = vector.broadcast %6 : vector<1x32xf32> to vector<8x32xf32>
    %9 = arith.mulf %7, %8 : vector<8x32xf32>
    %10 = arith.addf %4, %9 : vector<8x32xf32>
    %c0_6 = arith.constant 0 : index
    %c0_7 = arith.constant 0 : index
    %11 = vector.load %arg2[%c0_6, %c0_7] : memref<1x32xf32, #tpu.memory_space<vmem>>, vector<1x32xf32>
    %12 = vector.broadcast %11 : vector<1x32xf32> to vector<8x32xf32>
    %13 = arith.addf %10, %12 : vector<8x32xf32>
    %cst = arith.constant 0.000000e+00 : f32
    %14 = vector.broadcast %cst : f32 to vector<8x32xf32>
    %15 = arith.subf %14, %13 : vector<8x32xf32>
    %16 = math.exp %15 : vector<8x32xf32>
    %cst_8 = arith.constant 1.000000e+00 : f32
    %17 = vector.broadcast %cst_8 : f32 to vector<8x32xf32>
    %18 = arith.addf %17, %16 : vector<8x32xf32>
    %19 = tpu.reciprocal %18 {approx = true} : vector<8x32xf32> -> vector<8x32xf32>
    %c0_9 = arith.constant 0 : index
    %c0_10 = arith.constant 0 : index
    %20 = vector.load %arg3[%c0_9, %c0_10] : memref<1x32xf32, #tpu.memory_space<vmem>>, vector<1x32xf32>
    %21 = vector.broadcast %20 : vector<1x32xf32> to vector<8x32xf32>
    %22 = arith.mulf %19, %21 : vector<8x32xf32>
    %cst_11 = arith.constant dense<0.000000e+00> : vector<8xf32>
    %23 = vector.multi_reduction <add>, %22, %cst_11 [1] : vector<8x32xf32> to vector<8xf32>
    %24 = vector.shape_cast %23 : vector<8xf32> to vector<8x1xf32>
    %c0_12 = arith.constant 0 : index
    %25 = memref.load %arg4[%c0_12] : memref<1xf32, #tpu.memory_space<smem>>
    %26 = vector.broadcast %25 : f32 to vector<8x1xf32>
    %27 = arith.addf %24, %26 : vector<8x1xf32>
    %cst_13 = arith.constant 0.000000e+00 : f32
    %28 = vector.broadcast %cst_13 : f32 to vector<8x1xf32>
    %29 = arith.subf %28, %27 : vector<8x1xf32>
    %30 = math.exp %29 : vector<8x1xf32>
    %cst_14 = arith.constant 1.000000e+00 : f32
    %31 = vector.broadcast %cst_14 : f32 to vector<8x1xf32>
    %32 = arith.addf %31, %30 : vector<8x1xf32>
    %33 = tpu.reciprocal %32 {approx = true} : vector<8x1xf32> -> vector<8x1xf32>
    %c0_15 = arith.constant 0 : index
    %c0_16 = arith.constant 0 : index
    %34 = vector.load %arg5[%c0_15, %c0_16] : memref<8x2xf32, #tpu.memory_space<vmem>>, vector<8x1xf32>
    tpu.vector_store %arg5[%c0_15, %c0_16], %33 {strides = array<i32>} : memref<8x2xf32, #tpu.memory_space<vmem>>, vector<8x1xf32>,
    %cst_17 = arith.constant 0.000000e+00 : f32
    %35 = vector.broadcast %cst_17 : f32 to vector<8x1xf32>
    %36 = arith.cmpf oge, %27, %35 : vector<8x1xf32>
    %cst_18 = arith.constant 1.000000e+00 : f32
    %cst_19 = arith.constant 0.000000e+00 : f32
    %37 = vector.broadcast %cst_18 : f32 to vector<8x1xf32>
    %38 = vector.broadcast %cst_19 : f32 to vector<8x1xf32>
    %39 = arith.select %36, %37, %38 : vector<8x1xi1>, vector<8x1xf32>
    %c0_20 = arith.constant 0 : index
    %c1_21 = arith.constant 1 : index
    %40 = vector.load %arg5[%c0_20, %c1_21] : memref<8x2xf32, #tpu.memory_space<vmem>>, vector<8x1xf32>
    tpu.vector_store %arg5[%c0_20, %c1_21], %39 {strides = array<i32>} : memref<8x2xf32, #tpu.memory_space<vmem>>, vector<8x1xf32>,
    return
  }
}

</mosaic_0001>

<llo_original>
// kernel: mlp_forward.1
$region0: #{mlp_forward.1}
  #allocation0 [shape = 'u32[]', space=smem, size = 0x4, offset = 0x4, fixed_abs, tag = 'smem constant byte address 0x4 - core index']
  #allocation1 [shape = 'u32[144,128]{1,0:T(1,128)}', space=vmem, size = 0x12000, scoped, tag = 'internal scratch']
  #allocation2 [shape = 'f32[1]{0:T(128)S(6)}', space=smem, size = 0x200, scoped, tag = 'scoped memory for mlp_forward.1']
  %s0 = inlined_call_operand.vmem [shape: f32[8,2], index: 0, kind: input, shape index: {}]
  %s1 = inlined_call_operand.vmem [shape: f32[2,32], index: 1, kind: input, shape index: {}]
  %s2 = inlined_call_operand.vmem [shape: f32[1,32], index: 2, kind: input, shape index: {}]
  %s3 = inlined_call_operand.vmem [shape: f32[1,32], index: 3, kind: input, shape index: {}]
  %s4 = inlined_call_operand.<no memory space> [shape: f32[1], index: 4, kind: input, shape index: {}]
  %s5 = inlined_call_operand.vmem [shape: f32[8,2], index: 5, kind: output, shape index: {}]
  %s6 = sld [smem:[#allocation0]]
  $region30: #{mlp_forward.1} parent=0
    _
  %s8 = ssub.s32 1, %s6
  %s9 = scalar_select 0, %s8, %s6
  %10 = sst [smem:[#allocation2]] %s4
  // Predicated region
  $region2: #{mlp_forward.1} parent=0 // pred_check
    _
  $region3: #{mlp_forward.1} parent=0 // pred_check_branch
    %12 = sbr.rel (0) target = $region5
  $region4: #{mlp_forward.1} parent=0 // pred_region
    _
  $region5: #{mlp_forward.1} parent=0 // pred_fallthru
    _
  // Predicated region
  $region6: #{mlp_forward.1} parent=0 // pred_check
    _
  $region7: #{mlp_forward.1} parent=0 // pred_check_branch
    %14 = sbr.rel (0) target = $region9
  $region8: #{mlp_forward.1} parent=0 // pred_region
    _
  $region9: #{mlp_forward.1} parent=0 // pred_fallthru
    _
  // Predicated region
  $region10: #{mlp_forward.1} parent=0 // pred_check
    _
  $region11: #{mlp_forward.1} parent=0 // pred_check_branch
    %16 = sbr.rel (0) target = $region13
  $region12: #{mlp_forward.1} parent=0 // pred_region
    _
  $region13: #{mlp_forward.1} parent=0 // pred_fallthru
    _
  // Predicated region
  $region14: #{mlp_forward.1} parent=0 // pred_check
    _
  $region15: #{mlp_forward.1} parent=0 // pred_check_branch
    %18 = sbr.rel (0) target = $region17
  $region16: #{mlp_forward.1} parent=0 // pred_region
    _
  $region17: #{mlp_forward.1} parent=0 // pred_fallthru
    _
  // Predicated region
  $region18: #{mlp_forward.1} parent=0 // pred_check
    _
  $region19: #{mlp_forward.1} parent=0 // pred_check_branch
    %20 = sbr.rel (0) target = $region21
  $region20: #{mlp_forward.1} parent=0 // pred_region
    _
  $region21: #{mlp_forward.1} parent=0 // pred_fallthru
    _
  %v21 = vld [vmem:[%s0] sm:$0xff]
  %v22 = vld [vmem:[%s1] sm:$0x1]
  %24 = vset.pattern.permute.xlu0 0
  %25 = vperm.xlu0 %24, %v21
  %v26 = vpop.permute.xlu0 %25
  %v28 = vlaneseq
  %v29 = vshrl.u32 %v28, 7
  %v30 = vsub.s32 0, %v29
  %v31 = vrot.slane %v22, %v30
  %v32 = vmul.f32 %v26, %v31
  %v33 = vld [vmem:[%s1 + $0x1] sm:$0x1]
  %34 = vset.pattern.permute.xlu0 1
  %35 = vperm.xlu0 %34, %v21
  %v36 = vpop.permute.xlu0 %35
  %v38 = vlaneseq
  %v39 = vshrl.u32 %v38, 7
  %v40 = vsub.s32 0, %v39
  %v41 = vrot.slane %v33, %v40
  %v42 = vmul.f32 %v36, %v41
  %v43 = vadd.f32 %v32, %v42
  %v44 = vld [vmem:[%s2] sm:$0x1]
  %v46 = vlaneseq
  %v47 = vshrl.u32 %v46, 7
  %v48 = vsub.s32 0, %v47
  %v49 = vrot.slane %v44, %v48
  %v51 = vadd.f32 %v43, %v49
  %v52 = vsub.f32 0.0, %v51
  %v53 = vmul.f32 %v52, 1.442695
  %v54 = vpow.pop %v53
  %v55 = vadd.f32 %v54, 1.0
  %v56 = vrcp.pop %v55
  %v57 = vld [vmem:[%s3] sm:$0x1]
  %v59 = vlaneseq
  %v60 = vshrl.u32 %v59, 7
  %v61 = vsub.s32 0, %v60
  %v62 = vrot.slane %v57, %v61
  %v64 = vmul.f32 %v56, %v62
  %vm65 = vcmask 261120
  %v66 = vsel %vm65, %v64, 0.0
  %67 = vadd.xlane.f32.xlu0 %v66
  %v68 = vpop.xlane.xlu0 %67
  %s69 = sld [smem:[#allocation2]]
  %v70 = vstv %s69
  %v71 = vadd.f32 %v68, %v70
  %v72 = vsub.f32 0.0, %v71
  %v73 = vmul.f32 %v72, 1.442695
  %v74 = vpow.pop %v73
  %v75 = vadd.f32 %v74, 1.0
  %v76 = vrcp.pop %v75
  %vm77 = vcmask 7168
  %78 = vst.msk [vmem:[%s5] sm:$0xff] %vm77, %v76
  %vm79 = vcmp.ge.f32.partialorder %v71, 0.0
  %v80 = vsel %vm79, 1.0, 0.0
  %vm81 = vcmask 15368
  %82 = vst.msk [vmem:[%s5] sm:$0xff] %vm81, %v80
  // Predicated region
  $region22: #{mlp_forward.1} parent=0 // pred_check
    _
  $region23: #{mlp_forward.1} parent=0 // pred_check_branch
    %84 = sbr.rel (0) target = $region25
  $region24: #{mlp_forward.1} parent=0 // pred_region
    _
  $region25: #{mlp_forward.1} parent=0 // pred_fallthru
    _
  // Predicated region
  $region26: #{mlp_forward.1} parent=0 // pred_check
    _
  $region27: #{mlp_forward.1} parent=0 // pred_check_branch
    %86 = sbr.rel (0) target = $region29
  $region28: #{mlp_forward.1} parent=0 // pred_region
    _
  $region29: #{mlp_forward.1} parent=0 // pred_fallthru
    _

</llo_original>
